<compile_context>
chip_gen: v5e
topology: v5e:2x2
jax: 0.10.0
libtpu: 0.0.40
codegen_flags: <defaults>
</compile_context>

<pallas_src>
import math

import jax
import jax.numpy as jnp
from jax.experimental import pallas as pl
from jax.experimental.pallas import tpu as pltpu


# --------------------------------------------------------------------------- #
# Kernels
# --------------------------------------------------------------------------- #
def _make_kernel(nk, cast_x_dtype):
    """Build the kernel body; returns (kernel_fn, needs_acc_scratch)."""

    def _xtile(x_ref):
        x = x_ref[...]
        if cast_x_dtype is not None and x.dtype != cast_x_dtype:
            x = x.astype(cast_x_dtype)          # VPU cast in VMEM (no HBM cost)
        return x

    if nk == 1:
        # Single contraction step: one MXU matmul per batch tile, f32 accumulate.
        def kernel(x_ref, w_ref, b_ref, o_ref):
            acc = jnp.dot(_xtile(x_ref), w_ref[...],
                          preferred_element_type=jnp.float32)
            o_ref[...] = (acc + b_ref[...]).astype(o_ref.dtype)

        return kernel, False

    # K-tiled path: accumulate over the contraction grid axis in VMEM scratch.
    def kernel(x_ref, w_ref, b_ref, o_ref, acc_ref):
        k = pl.program_id(1)

        @pl.when(k == 0)
        def _init():
            acc_ref[...] = jnp.zeros_like(acc_ref)

        acc_ref[...] += jnp.dot(_xtile(x_ref), w_ref[...],
                                preferred_element_type=jnp.float32)

        @pl.when(k == nk - 1)
        def _finalize():
            o_ref[...] = (acc_ref[...] + b_ref[...]).astype(o_ref.dtype)

    return kernel, True


# --------------------------------------------------------------------------- #
# Tiling heuristics
# --------------------------------------------------------------------------- #
def _pick_batch_tile(B, row_bytes, budget_bytes=8 << 20):
    """Batch rows per grid step.

    A single grid step whenever the x/out tiles fit a modest VMEM budget:
    avoids duplicated fetches of the grid-invariant fused weight (one per
    TensorCore on v7x when the batch axis is sharded) and per-step grid
    overhead on single-TC chips (v5e/v6e).  Only split B when the per-tile
    activation traffic is large enough to both need splitting and amortize a
    re-fetch of Wc.
    """
    max_rows = max(8, budget_bytes // max(row_bytes, 1))
    if B <= max_rows:
        return B
    best = None
    for cand in range(8, max_rows + 1, 8):    # sublane-aligned divisors of B
        if B % cand == 0:
            best = cand
    return best if best is not None else B


def _pick_k_tile(K, out_cols, itemsize, budget_bytes):
    """Rows of the fused weight per grid step (contraction tiling)."""
    if K * out_cols * itemsize <= budget_bytes:
        return K
    best = None
    for kt in range(128, K, 128):             # lane-aligned divisors of K
        if K % kt == 0 and kt * out_cols * itemsize <= budget_bytes:
            best = kt
    if best is None:
        # TODO(synk): also tile the Cout*N output axis when even a single
        # 128-row slab of the fused weight exceeds the VMEM budget.
        return K
    return best


def _pad_nodes(N, Cout, max_ratio=2.0):
    """Smallest N_pad >= N making Cout*N_pad a multiple of 128 (lane-dense
    output stores), if the padding overhead is modest; else keep N."""
    if (Cout * N) % 128 == 0:
        return N
    step = 128 // math.gcd(Cout, 128)
    n_pad = ((N + step - 1) // step) * step
    return n_pad if n_pad <= max(int(max_ratio * N), N + 8) else N


# --------------------------------------------------------------------------- #
# Parameter folding (one-time, outside the per-call kernel)
# --------------------------------------------------------------------------- #
def _edge_softmax(adj, e):
    """F.softmax(logits, dim=1) with logits[adj>0] = e (row-major order of the
    mask, matching `adj[self.m] = self.e`), else -9e15."""
    N = adj.shape[0]
    mask = (adj > 0).reshape(-1)
    pos = jnp.cumsum(mask.astype(jnp.int32)) - 1
    gathered = e[jnp.clip(pos, 0, e.shape[0] - 1)]
    logits = jnp.where(mask, gathered, jnp.float32(-9e15)).reshape(N, N)
    return jax.nn.softmax(logits, axis=1)


def _fold_params(W, adj, e, bias, *, fused_dtype=jnp.bfloat16, pad_lanes=True):
    """Fold (W, adj, e, bias) into the fused matmul weight.

    Returns (Wc, b_flat, (N, Cin, Cout, N_pad)).  Call this ONCE per set of
    parameters (see make_graph_conv_no_bn); it is batch-independent.
    """
    if W.ndim != 3 or W.shape[0] != 2:
        raise ValueError(f"W must have shape (2, Cin, Cout), got {W.shape}")
    _, Cin, Cout = W.shape
    N = adj.shape[0]
    if adj.shape != (N, N):
        raise ValueError(f"adj must be square, got {adj.shape}")
    # Explicit shape check (previous version silently clipped the gather).
    try:
        nnz = int(jnp.sum(adj > 0))
    except jax.errors.ConcretizationTypeError:
        nnz = None
    if nnz is not None and e.shape[0] != nnz:
        raise ValueError(f"e has {e.shape[0]} entries but adj has {nnz} nonzeros")

    A = _edge_softmax(adj, e).astype(jnp.float32)          # (N, N)
    eye = jnp.eye(N, dtype=jnp.float32)
    A_self = A * eye                                       # adj * M
    A_neigh = A * (1.0 - eye)                              # adj * (1 - M)

    W0 = W[0].astype(jnp.float32)
    W1 = W[1].astype(jnp.float32)
    # Wc4[m, c, o, n] = A_self[n, m] W0[c, o] + A_neigh[n, m] W1[c, o]
    Wc4 = (jnp.einsum('nm,co->mcon', A_self, W0) +
           jnp.einsum('nm,co->mcon', A_neigh, W1))         # (N, Cin, Cout, N)

    N_pad = _pad_nodes(N, Cout) if pad_lanes else N
    if N_pad != N:
        Wc4 = jnp.pad(Wc4, ((0, 0), (0, 0), (0, 0), (0, N_pad - N)))
    Wc = Wc4.reshape(N * Cin, Cout * N_pad).astype(fused_dtype)
    # bias stays f32 (added after the f32 accumulate)
    b_flat = jnp.repeat(bias.astype(jnp.float32), N_pad).reshape(1, Cout * N_pad)
    return Wc, b_flat, (N, Cin, Cout, N_pad)


# --------------------------------------------------------------------------- #
# Kernel launch on pre-folded parameters
# --------------------------------------------------------------------------- #
def _apply_folded(x, Wc, b_flat, N, Cin, Cout, N_pad, *,
                  wc_block_budget_bytes=8 << 20):
    """x: (B, N, Cin) f32 -> (B, Cout, N), using pre-folded Wc / b_flat."""
    B, N_x, Cin_x = x.shape
    if (N_x, Cin_x) != (N, Cin):
        raise ValueError(f"x has (N, Cin)=({N_x}, {Cin_x}), expected ({N}, {Cin})")
    K = N * Cin
    OP = Cout * N_pad
    x_itemsize = jnp.dtype(x.dtype).itemsize
    wc_itemsize = jnp.dtype(Wc.dtype).itemsize

    # Feed the MXU a native low-precision matmul when the fused weight is bf16;
    # the cast happens on the VMEM tile (no extra HBM traffic), accumulate f32.
    cast_x_dtype = Wc.dtype if wc_itemsize < x_itemsize else None

    TB = _pick_batch_tile(B, row_bytes=(K + OP) * x_itemsize)
    KT = _pick_k_tile(K, OP, wc_itemsize, wc_block_budget_bytes)
    nb, nk = B // TB, K // KT

    kernel, needs_acc = _make_kernel(nk, cast_x_dtype)

    x_flat = x.reshape(B, K)                 # lane-dense flat view (free)

    if nk == 1:
        grid = (nb,)
        in_specs = [
            pl.BlockSpec((TB, K), lambda i: (i, 0)),
            # Constant index maps: the fused weight / bias stay VMEM-resident
            # across batch steps.
            # TODO(synk): pipeline_mode=pl.Buffered(1) on these two specs would
            # drop the second (unused) VMEM buffer once N/Cin/Cout grow.
            pl.BlockSpec((K, OP), lambda i: (0, 0)),
            pl.BlockSpec((1, OP), lambda i: (0, 0)),
        ]
        out_specs = pl.BlockSpec((TB, OP), lambda i: (i, 0))
        scratch_shapes = []
        dim_sem = ("parallel",)
    else:
        grid = (nb, nk)                      # reduction axis last
        in_specs = [
            pl.BlockSpec((TB, KT), lambda i, k: (i, k)),
            pl.BlockSpec((KT, OP), lambda i, k: (k, 0)),
            pl.BlockSpec((1, OP), lambda i, k: (0, 0)),
        ]
        out_specs = pl.BlockSpec((TB, OP), lambda i, k: (i, 0))
        scratch_shapes = [pltpu.VMEM((TB, OP), jnp.float32)]
        dim_sem = ("parallel", "arbitrary")

    cost = pl.CostEstimate(
        flops=2 * B * K * OP,
        transcendentals=0,
        bytes_accessed=(B * K * x_itemsize + B * OP * x_itemsize
                        + Wc.size * wc_itemsize + b_flat.size * 4),
    )

    # VMEM estimate (double-buffered x / Wc / out tiles + bias + accumulator);
    # only raise the scoped default when actually needed.  Tile budgets keep
    # this well under v7x's 64 MiB physical VMEM.
    est_vmem = (2 * TB * KT * x_itemsize + 2 * KT * OP * wc_itemsize
                + 2 * TB * OP * x_itemsize + 2 * OP * 4
                + (TB * OP * 4 if needs_acc else 0))
    compiler_kwargs = dict(dimension_semantics=dim_sem)
    if est_vmem > (16 << 20):
        compiler_kwargs["vmem_limit_bytes"] = min(est_vmem + (8 << 20), 56 << 20)

    out_flat = pl.pallas_call(
        kernel,
        out_shape=jax.ShapeDtypeStruct((B, OP), x.dtype),
        grid_spec=pltpu.PrefetchScalarGridSpec(
            num_scalar_prefetch=0,
            grid=grid,
            in_specs=in_specs,
            out_specs=out_specs,
            scratch_shapes=scratch_shapes,
        ),
        compiler_params=pltpu.CompilerParams(**compiler_kwargs),
        cost_estimate=cost,
    )(x_flat, Wc, b_flat)

    # y[b, o, n] = out_flat[b, o*N_pad + n]  == gconv(x).transpose(1, 2)
    out = out_flat.reshape(B, Cout, N_pad)
    if N_pad != N:
        out = out[:, :, :N]
    return out


# --------------------------------------------------------------------------- #
# Public API
# --------------------------------------------------------------------------- #
def make_graph_conv_no_bn(W, adj, e, bias, *, fused_dtype=jnp.bfloat16,
                          wc_block_budget_bytes=8 << 20):
    """Fold the parameters ONCE and return a jitted apply(x) -> (B, Cout, N).

    Intended entry point: the fused weight is built a single time and cached
    on device via the jit closure, instead of being re-derived per forward.
    """
    Wc, b_flat, (N, Cin, Cout, N_pad) = _fold_params(
        W, adj, e, bias, fused_dtype=fused_dtype)

    @jax.jit
    def apply_fn(x):
        return _apply_folded(x, Wc, b_flat, N, Cin, Cout, N_pad,
                             wc_block_budget_bytes=wc_block_budget_bytes)

    return apply_fn


def graph_conv_no_bn(x, W, adj, e, bias, *, fused_dtype=jnp.bfloat16,
                     wc_block_budget_bytes=8 << 20):
    """One-shot convenience (re-folds parameters each call).  Prefer
    make_graph_conv_no_bn(...) when calling repeatedly with fixed parameters."""
    Wc, b_flat, (N, Cin, Cout, N_pad) = _fold_params(
        W, adj, e, bias, fused_dtype=fused_dtype)
    return _apply_folded(x, Wc, b_flat, N, Cin, Cout, N_pad,
                         wc_block_budget_bytes=wc_block_budget_bytes)


def graph_conv_no_bn_ref(x, W, adj, e, bias):
    """Pure-JAX reference reproducing the PyTorch module."""
    hp = jax.lax.Precision.HIGHEST
    N = adj.shape[0]
    A = _edge_softmax(adj, e)
    eye = jnp.eye(N, dtype=x.dtype)
    h0 = jnp.einsum('bnc,co->bno', x, W[0], precision=hp)
    h1 = jnp.einsum('bnc,co->bno', x, W[1], precision=hp)
    out = (jnp.einsum('nm,bmo->bno', A * eye, h0, precision=hp) +
           jnp.einsum('nm,bmo->bno', A * (1.0 - eye), h1, precision=hp))
    out = out + bias.reshape(1, 1, -1)
    return jnp.transpose(out, (0, 2, 1))


# --------------------------------------------------------------------------- #
# Self-test
# --------------------------------------------------------------------------- #
def _ring_adj(N):
    idx = jnp.arange(N)
    adj = jnp.zeros((N, N), jnp.float32)
    adj = adj.at[idx, idx].set(1.0)
    adj = adj.at[idx, (idx + 1) % N].set(1.0)
    adj = adj.at[idx, (idx - 1) % N].set(1.0)
    return adj


def _make_inputs(key, B, N, Cin, Cout):
    kx, kw, ke, kb = jax.random.split(key, 4)
    adj = _ring_adj(N)
    nnz = int(jnp.sum(adj > 0))
    x = jax.random.normal(kx, (B, N, Cin), dtype=jnp.float32)
    W = jax.random.normal(kw, (2, Cin, Cout), dtype=jnp.float32) / jnp.sqrt(Cin)
    e = 1.0 + 0.5 * jax.random.normal(ke, (nnz,), dtype=jnp.float32)
    bias = 0.1 * jax.random.normal(kb, (Cout,), dtype=jnp.float32)
    return x, W, adj, e, bias


if __name__ == "__main__":
    key = jax.random.PRNGKey(0)
    k1, k2 = jax.random.split(key)

    # Pose-GCN-like shapes: 12 graph nodes, input_dim=32, output_dim=64, batch 16.
    B, N, Cin, Cout = 16, 12, 32, 64
    x, W, adj, e, bias = _make_inputs(k1, B, N, Cin, Cout)
    ref = graph_conv_no_bn_ref(x, W, adj, e, bias)

    # 1) f32 fused weight: tight check of the kernel math vs the reference.
    out_f32 = jax.block_until_ready(
        graph_conv_no_bn(x, W, adj, e, bias, fused_dtype=jnp.float32))
    assert out_f32.shape == (B, Cout, N)
    assert jnp.allclose(out_f32, ref, atol=5e-4, rtol=5e-4), "f32 path mismatch"

    # 2) Production path: parameters folded ONCE (bf16 fused weight), jitted apply.
    #    bf16 weight quantization loosens the tolerance accordingly.
    apply_fn = make_graph_conv_no_bn(W, adj, e, bias)
    out_bf16 = jax.block_until_ready(apply_fn(x))
    out_bf16 = jax.block_until_ready(apply_fn(x))   # second call reuses cached Wc
    assert out_bf16.shape == (B, Cout, N)
    assert jnp.allclose(out_bf16, ref, atol=3e-2, rtol=3e-2), "bf16 path mismatch"

    # 3) Force the K-tiled accumulator path (tiny fused-weight block budget).
    out_kt = jax.block_until_ready(
        graph_conv_no_bn(x, W, adj, e, bias, fused_dtype=jnp.float32,
                         wc_block_budget_bytes=512 * 1024))
    assert jnp.allclose(out_kt, ref, atol=5e-4, rtol=5e-4), "K-tiled path mismatch"

    # 4) Non-lane-aligned joint count (Cout*N % 128 != 0) exercises output padding.
    B2, N2, Cin2, Cout2 = 6, 17, 24, 48
    x2, W2, adj2, e2, bias2 = _make_inputs(k2, B2, N2, Cin2, Cout2)
    ref2 = graph_conv_no_bn_ref(x2, W2, adj2, e2, bias2)
    out2 = jax.block_until_ready(
        graph_conv_no_bn(x2, W2, adj2, e2, bias2, fused_dtype=jnp.float32))
    assert out2.shape == (B2, Cout2, N2)
    assert jnp.allclose(out2, ref2, atol=5e-4, rtol=5e-4), "padded path mismatch"

    print("KERNEL_OK")
</pallas_src>

<mosaic_0001>
module attributes {stable_mosaic.version = 11 : i64} {
  func.func @kernel(%arg0: i32, %arg1: memref<16x384xf32, #tpu.memory_space<vmem>>, %arg2: memref<384x768xf32, #tpu.memory_space<vmem>>, %arg3: memref<1x768xf32, #tpu.memory_space<vmem>>, %arg4: memref<16x768xf32, #tpu.memory_space<vmem>>) attributes {dimension_semantics = [#tpu.dimension_semantics<parallel>], iteration_bounds = array<i64: 1>, scalar_prefetch = 0 : i64, scratch_operands = 0 : i64, tpu.core_type = #tpu.core_type<tc>, window_params = [{transform_indices = @transform_0, window_bounds = array<i64: 16, 384>}, {pipeline_mode = #tpu.pipeline_mode<synchronous>, transform_indices = @transform_1, window_bounds = array<i64: 384, 768>}, {pipeline_mode = #tpu.pipeline_mode<synchronous>, transform_indices = @transform_2, window_bounds = array<i64: 1, 768>}, {transform_indices = @transform_3, window_bounds = array<i64: 16, 768>}]} {
    %c0 = arith.constant 0 : index
    %c0_0 = arith.constant 0 : index
    %0 = vector.load %arg1[%c0, %c0_0] : memref<16x384xf32, #tpu.memory_space<vmem>>, vector<16x384xf32>
    %c0_1 = arith.constant 0 : index
    %c0_2 = arith.constant 0 : index
    %1 = vector.load %arg2[%c0_1, %c0_2] : memref<384x768xf32, #tpu.memory_space<vmem>>, vector<384x768xf32>
    %cst = arith.constant dense<0.000000e+00> : vector<16x768xf32>
    %2 = tpu.matmul %0, %1, %cst {dimension_numbers = #tpu.dot_dimension_numbers<[1], [0], [0], [1], [0, 0, 1, 1], [], []>} : vector<16x384xf32>, vector<384x768xf32>, vector<16x768xf32> -> vector<16x768xf32>
    %c0_3 = arith.constant 0 : index
    %c0_4 = arith.constant 0 : index
    %3 = vector.load %arg3[%c0_3, %c0_4] : memref<1x768xf32, #tpu.memory_space<vmem>>, vector<1x768xf32>
    %4 = vector.broadcast %3 : vector<1x768xf32> to vector<16x768xf32>
    %5 = arith.addf %2, %4 : vector<16x768xf32>
    %c0_5 = arith.constant 0 : index
    %c0_6 = arith.constant 0 : index
    %6 = vector.load %arg4[%c0_5, %c0_6] : memref<16x768xf32, #tpu.memory_space<vmem>>, vector<16x768xf32>
    tpu.vector_store %arg4[%c0_5, %c0_6], %5 {strides = array<i32>} : memref<16x768xf32, #tpu.memory_space<vmem>>, vector<16x768xf32>,
    return
  }
  func.func @transform_0(%arg0: i32) -> (i32, i32) {
    %c0_i32 = arith.constant 0 : i32
    %c0_i32_0 = arith.constant 0 : i32
    return %arg0, %c0_i32 : i32, i32
  }
  func.func @transform_1(%arg0: i32) -> (i32, i32) {
    %c0_i32 = arith.constant 0 : i32
    %c0_i32_0 = arith.constant 0 : i32
    %c0_i32_1 = arith.constant 0 : i32
    return %c0_i32, %c0_i32_0 : i32, i32
  }
  func.func @transform_2(%arg0: i32) -> (i32, i32) {
    %c0_i32 = arith.constant 0 : i32
    %c0_i32_0 = arith.constant 0 : i32
    %c0_i32_1 = arith.constant 0 : i32
    return %c0_i32, %c0_i32_0 : i32, i32
  }
  func.func @transform_3(%arg0: i32) -> (i32, i32) {
    %c0_i32 = arith.constant 0 : i32
    %c0_i32_0 = arith.constant 0 : i32
    return %arg0, %c0_i32 : i32, i32
  }
}

</mosaic_0001>

<llo_original>
// kernel: tpu_custom_call.1
$region0: #{tpu_custom_call.1}
  #allocation0 [shape = 'u32[]', space=smem, size = 0x4, offset = 0x4, fixed_abs, tag = 'smem constant byte address 0x4 - core index']
  #allocation1 [shape = 'u32[72,128]{1,0:T(1,128)}', space=vmem, size = 0x9000, scoped, tag = 'internal scratch']
  %s0 = inlined_call_operand.hbm [shape: f32[16,384], index: 0, kind: input, shape index: {}]
  %s1 = inlined_call_operand.hbm [shape: f32[384,768], index: 1, kind: input, shape index: {}]
  %s2 = inlined_call_operand.hbm [shape: f32[1,768], index: 2, kind: input, shape index: {}]
  %s3 = inlined_call_operand.hbm [shape: f32[16,768], index: 3, kind: output, shape index: {}]
  %s4 = sld [smem:[#allocation0]]
  $region34: #{tpu_custom_call.1} parent=0
    _
  %s6 = ssub.s32 1, %s4
  %s7 = scalar_select 0, %s6, %s4
  $region1: #{tpu_custom_call.1} parent=0
    #allocation2 [shape = 'u8[24576]{0}', space=vmem, size = 0x6000, scoped, tag = 'input window, operand 0, single buffered']
    #allocation3 [shape = 's32[1]{0}', space=sflag, size = 0x4, scoped, tag = 'scoped memory for tpu_custom_call.1']
    #allocation4 [shape = 's32[1]{0}', space=sflag, size = 0x4, scoped, tag = 'scoped memory for tpu_custom_call.1']
    #allocation5 [shape = 'u8[1179648]{0}', space=vmem, size = 0x120000, scoped, tag = 'input window, operand 1, single buffered']
    #allocation6 [shape = 's32[1]{0}', space=sflag, size = 0x4, scoped, tag = 'scoped memory for tpu_custom_call.1']
    #allocation7 [shape = 'u8[3072]{0}', space=vmem, size = 0xc00, scoped, tag = 'input window, operand 2, single buffered']
    #allocation8 [shape = 'u8[49152]{0}', space=vmem, size = 0xc000, scoped, tag = 'output window, operand 0, single buffered']
    %8 = vsyncpa [#allocation3], 0
    %9 = vsyncpa [#allocation6], 0
    %10 = vsyncpa [#allocation4], 0
    // Predicated region
    $region2: #{tpu_custom_call.1} parent=1 // pred_check
      _
    $region3: #{tpu_custom_call.1} parent=1 // pred_check_branch
      %12 = sbr.rel (0) target = $region5
    $region4: #{tpu_custom_call.1} parent=1 // pred_region
      %14 = vsyncadd [#allocation3], 0
      %s15 = sshll.u32 %s0, 4
      %s16 = int_to_ptr.hbm [resolvable:$true] %s15
      %s17 = sshll.u32 [#allocation2], 4
      %s18 = int_to_ptr.vmem [resolvable:$true] %s17
      %23 = dma.hbm_to_vmem [thread:$0]  %s16, 768, %s18, [#allocation3], 384, 384, 24
    $region5: #{tpu_custom_call.1} parent=1 // pred_fallthru
      _
    // Predicated region
    $region6: #{tpu_custom_call.1} parent=1 // pred_check
      _
    $region7: #{tpu_custom_call.1} parent=1 // pred_check_branch
      %25 = sbr.rel (0) target = $region9
    $region8: #{tpu_custom_call.1} parent=1 // pred_region
      %27 = vsyncadd [#allocation6], 0
      %s28 = sshll.u32 %s1, 4
      %s29 = int_to_ptr.hbm [resolvable:$true] %s28
      %s30 = sshll.u32 [#allocation5], 4
      %s31 = int_to_ptr.vmem [resolvable:$true] %s30
      %36 = dma.hbm_to_vmem [thread:$0]  %s29, 36864, %s31, [#allocation6], 768, 768, 48
    $region9: #{tpu_custom_call.1} parent=1 // pred_fallthru
      _
    // Predicated region
    $region10: #{tpu_custom_call.1} parent=1 // pred_check
      _
    $region11: #{tpu_custom_call.1} parent=1 // pred_check_branch
      %38 = sbr.rel (0) target = $region13
    $region12: #{tpu_custom_call.1} parent=1 // pred_region
      %40 = vsyncadd [#allocation6], 0
      %s42 = sshll.u32 %s2, 4
      %s43 = int_to_ptr.hbm [resolvable:$true] %s42
      %s44 = sshll.u32 [#allocation7], 4
      %s45 = int_to_ptr.vmem [resolvable:$true] %s44
      %47 = dma.hbm_to_vmem [thread:$0]  %s43, 96, %s45, [#allocation6]
    $region13: #{tpu_custom_call.1} parent=1 // pred_fallthru
      _
    // Predicated region
    $region14: #{tpu_custom_call.1} parent=1 // pred_check
      _
    $region15: #{tpu_custom_call.1} parent=1 // pred_check_branch
      %49 = sbr.rel (0) target = $region17
    $region16: #{tpu_custom_call.1} parent=1 // pred_region
      %51 = dma.done [#allocation3], 768
    $region17: #{tpu_custom_call.1} parent=1 // pred_fallthru
      _
    // Predicated region
    $region18: #{tpu_custom_call.1} parent=1 // pred_check
      _
    $region19: #{tpu_custom_call.1} parent=1 // pred_check_branch
      %53 = sbr.rel (0) target = $region21
    $region20: #{tpu_custom_call.1} parent=1 // pred_region
      %55 = dma.done [#allocation6], 36864
    $region21: #{tpu_custom_call.1} parent=1 // pred_fallthru
      _
    // Predicated region
    $region22: #{tpu_custom_call.1} parent=1 // pred_check
      _
    $region23: #{tpu_custom_call.1} parent=1 // pred_check_branch
      %57 = sbr.rel (0) target = $region25
    $region24: #{tpu_custom_call.1} parent=1 // pred_region
      %59 = dma.done [#allocation6], 96
    $region25: #{tpu_custom_call.1} parent=1 // pred_fallthru
      _
    %v60 = vld [vmem:[#allocation2] sm:$0xff]
    %v61 = vld [vmem:[#allocation2 + $0x8] sm:$0xff]
    %v62 = vld [vmem:[#allocation2 + $0x10] sm:$0xff]
    %v63 = vld [vmem:[#allocation2 + $0x18] sm:$0xff]
    %v64 = vld [vmem:[#allocation2 + $0x20] sm:$0xff]
    %v65 = vld [vmem:[#allocation2 + $0x28] sm:$0xff]
    %v66 = vld [vmem:[#allocation5] sm:$0xff]
    %v67 = vld [vmem:[#allocation5 + $0x8] sm:$0xff]
    %v68 = vld [vmem:[#allocation5 + $0x10] sm:$0xff]
    %v69 = vld [vmem:[#allocation5 + $0x18] sm:$0xff]
    %v70 = vld [vmem:[#allocation5 + $0x20] sm:$0xff]
    %v71 = vld [vmem:[#allocation5 + $0x28] sm:$0xff]
    %v72 = vld [vmem:[#allocation5 + $0x30] sm:$0xff]
    %v73 = vld [vmem:[#allocation5 + $0x38] sm:$0xff]
    %v74 = vld [vmem:[#allocation5 + $0x40] sm:$0xff]
    %v75 = vld [vmem:[#allocation5 + $0x48] sm:$0xff]
    %v76 = vld [vmem:[#allocation5 + $0x50] sm:$0xff]
    %v77 = vld [vmem:[#allocation5 + $0x58] sm:$0xff]
    %v78 = vld [vmem:[#allocation5 + $0x60] sm:$0xff]
    %v79 = vld [vmem:[#allocation5 + $0x68] sm:$0xff]
    %v80 = vld [vmem:[#allocation5 + $0x70] sm:$0xff]
    %v81 = vld [vmem:[#allocation5 + $0x78] sm:$0xff]
    %v82 = vld [vmem:[#allocation5 + $0x80] sm:$0xff]
    %v83 = vld [vmem:[#allocation5 + $0x88] sm:$0xff]
    %v84 = vld [vmem:[#allocation5 + $0x90] sm:$0xff]
    %v85 = vld [vmem:[#allocation5 + $0x98] sm:$0xff]
    %v86 = vld [vmem:[#allocation5 + $0xa0] sm:$0xff]
    %v87 = vld [vmem:[#allocation5 + $0xa8] sm:$0xff]
    %v88 = vld [vmem:[#allocation5 + $0xb0] sm:$0xff]
    %v89 = vld [vmem:[#allocation5 + $0xb8] sm:$0xff]
    %v90 = vld [vmem:[#allocation5 + $0xc0] sm:$0xff]
    %v91 = vld [vmem:[#allocation5 + $0xc8] sm:$0xff]
    %v92 = vld [vmem:[#allocation5 + $0xd0] sm:$0xff]
    %v93 = vld [vmem:[#allocation5 + $0xd8] sm:$0xff]
    %v94 = vld [vmem:[#allocation5 + $0xe0] sm:$0xff]
    %v95 = vld [vmem:[#allocation5 + $0xe8] sm:$0xff]
    %v96 = vld [vmem:[#allocation5 + $0xf0] sm:$0xff]
    %v97 = vld [vmem:[#allocation5 + $0xf8] sm:$0xff]
    %v98 = vld [vmem:[#allocation5 + $0x100] sm:$0xff]
    %v99 = vld [vmem:[#allocation5 + $0x108] sm:$0xff]
    %v100 = vld [vmem:[#allocation5 + $0x110] sm:$0xff]
    %v101 = vld [vmem:[#allocation5 + $0x118] sm:$0xff]
    %v102 = vld [vmem:[#allocation5 + $0x120] sm:$0xff]
    %v103 = vld [vmem:[#allocation5 + $0x128] sm:$0xff]
    %v104 = vld [vmem:[#allocation5 + $0x130] sm:$0xff]
    %v105 = vld [vmem:[#allocation5 + $0x138] sm:$0xff]
    %v106 = vld [vmem:[#allocation5 + $0x140] sm:$0xff]
    %v107 = vld [vmem:[#allocation5 + $0x148] sm:$0xff]
    %v108 = vld [vmem:[#allocation5 + $0x150] sm:$0xff]
    %v109 = vld [vmem:[#allocation5 + $0x158] sm:$0xff]
    %v110 = vld [vmem:[#allocation5 + $0x160] sm:$0xff]
    %v111 = vld [vmem:[#allocation5 + $0x168] sm:$0xff]
    %v112 = vld [vmem:[#allocation5 + $0x170] sm:$0xff]
    %v113 = vld [vmem:[#allocation5 + $0x178] sm:$0xff]
    %v114 = vld [vmem:[#allocation5 + $0x180] sm:$0xff]
    %v115 = vld [vmem:[#allocation5 + $0x188] sm:$0xff]
    %v116 = vld [vmem:[#allocation5 + $0x190] sm:$0xff]
    %v117 = vld [vmem:[#allocation5 + $0x198] sm:$0xff]
    %v118 = vld [vmem:[#allocation5 + $0x1a0] sm:$0xff]
    %v119 = vld [vmem:[#allocation5 + $0x1a8] sm:$0xff]
    %v120 = vld [vmem:[#allocation5 + $0x1b0] sm:$0xff]
    %v121 = vld [vmem:[#allocation5 + $0x1b8] sm:$0xff]
    %v122 = vld [vmem:[#allocation5 + $0x1c0] sm:$0xff]
    %v123 = vld [vmem:[#allocation5 + $0x1c8] sm:$0xff]
    %v124 = vld [vmem:[#allocation5 + $0x1d0] sm:$0xff]
    %v125 = vld [vmem:[#allocation5 + $0x1d8] sm:$0xff]
    %v126 = vld [vmem:[#allocation5 + $0x1e0] sm:$0xff]
    %v127 = vld [vmem:[#allocation5 + $0x1e8] sm:$0xff]
    %v128 = vld [vmem:[#allocation5 + $0x1f0] sm:$0xff]
    %v129 = vld [vmem:[#allocation5 + $0x1f8] sm:$0xff]
    %v130 = vld [vmem:[#allocation5 + $0x200] sm:$0xff]
    %v131 = vld [vmem:[#allocation5 + $0x208] sm:$0xff]
    %v132 = vld [vmem:[#allocation5 + $0x210] sm:$0xff]
    %v133 = vld [vmem:[#allocation5 + $0x218] sm:$0xff]
    %v134 = vld [vmem:[#allocation5 + $0x220] sm:$0xff]
    %v135 = vld [vmem:[#allocation5 + $0x228] sm:$0xff]
    %v136 = vld [vmem:[#allocation5 + $0x230] sm:$0xff]
    %v137 = vld [vmem:[#allocation5 + $0x238] sm:$0xff]
    %v138 = vld [vmem:[#allocation5 + $0x240] sm:$0xff]
    %v139 = vld [vmem:[#allocation5 + $0x248] sm:$0xff]
    %v140 = vld [vmem:[#allocation5 + $0x250] sm:$0xff]
    %v141 = vld [vmem:[#allocation5 + $0x258] sm:$0xff]
    %v142 = vld [vmem:[#allocation5 + $0x260] sm:$0xff]
    %v143 = vld [vmem:[#allocation5 + $0x268] sm:$0xff]
    %v144 = vld [vmem:[#allocation5 + $0x270] sm:$0xff]
    %v145 = vld [vmem:[#allocation5 + $0x278] sm:$0xff]
    %v146 = vld [vmem:[#allocation5 + $0x280] sm:$0xff]
    %v147 = vld [vmem:[#allocation5 + $0x288] sm:$0xff]
    %v148 = vld [vmem:[#allocation5 + $0x290] sm:$0xff]
    %v149 = vld [vmem:[#allocation5 + $0x298] sm:$0xff]
    %v150 = vld [vmem:[#allocation5 + $0x2a0] sm:$0xff]
    %v151 = vld [vmem:[#allocation5 + $0x2a8] sm:$0xff]
    %v152 = vld [vmem:[#allocation5 + $0x2b0] sm:$0xff]
    %v153 = vld [vmem:[#allocation5 + $0x2b8] sm:$0xff]
    %v154 = vld [vmem:[#allocation5 + $0x2c0] sm:$0xff]
    %v155 = vld [vmem:[#allocation5 + $0x2c8] sm:$0xff]
    %v156 = vld [vmem:[#allocation5 + $0x2d0] sm:$0xff]
    %v157 = vld [vmem:[#allocation5 + $0x2d8] sm:$0xff]
    %v158 = vld [vmem:[#allocation5 + $0x2e0] sm:$0xff]
    %v159 = vld [vmem:[#allocation5 + $0x2e8] sm:$0xff]
    %v160 = vld [vmem:[#allocation5 + $0x2f0] sm:$0xff]
    %v161 = vld [vmem:[#allocation5 + $0x2f8] sm:$0xff]
    %v162 = vld [vmem:[#allocation5 + $0x300] sm:$0xff]
    %v163 = vld [vmem:[#allocation5 + $0x308] sm:$0xff]
    %v164 = vld [vmem:[#allocation5 + $0x310] sm:$0xff]
    %v165 = vld [vmem:[#allocation5 + $0x318] sm:$0xff]
    %v166 = vld [vmem:[#allocation5 + $0x320] sm:$0xff]
    %v167 = vld [vmem:[#allocation5 + $0x328] sm:$0xff]
    %v168 = vld [vmem:[#allocation5 + $0x330] sm:$0xff]
    %v169 = vld [vmem:[#allocation5 + $0x338] sm:$0xff]
    %v170 = vld [vmem:[#allocation5 + $0x340] sm:$0xff]
    %v171 = vld [vmem:[#allocation5 + $0x348] sm:$0xff]
    %v172 = vld [vmem:[#allocation5 + $0x350] sm:$0xff]
    %v173 = vld [vmem:[#allocation5 + $0x358] sm:$0xff]
    %v174 = vld [vmem:[#allocation5 + $0x360] sm:$0xff]
    %v175 = vld [vmem:[#allocation5 + $0x368] sm:$0xff]
    %v176 = vld [vmem:[#allocation5 + $0x370] sm:$0xff]
    %v177 = vld [vmem:[#allocation5 + $0x378] sm:$0xff]
    %v178 = vld [vmem:[#allocation5 + $0x380] sm:$0xff]
    %v179 = vld [vmem:[#allocation5 + $0x388] sm:$0xff]
    %v180 = vld [vmem:[#allocation5 + $0x390] sm:$0xff]
    %v181 = vld [vmem:[#allocation5 + $0x398] sm:$0xff]
    %v182 = vld [vmem:[#allocation5 + $0x3a0] sm:$0xff]
    %v183 = vld [vmem:[#allocation5 + $0x3a8] sm:$0xff]
    %v184 = vld [vmem:[#allocation5 + $0x3b0] sm:$0xff]
    %v185 = vld [vmem:[#allocation5 + $0x3b8] sm:$0xff]
    %v186 = vld [vmem:[#allocation5 + $0x3c0] sm:$0xff]
    %v187 = vld [vmem:[#allocation5 + $0x3c8] sm:$0xff]
    %v188 = vld [vmem:[#allocation5 + $0x3d0] sm:$0xff]
    %v189 = vld [vmem:[#allocation5 + $0x3d8] sm:$0xff]
    %v190 = vld [vmem:[#allocation5 + $0x3e0] sm:$0xff]
    %v191 = vld [vmem:[#allocation5 + $0x3e8] sm:$0xff]
    %v192 = vld [vmem:[#allocation5 + $0x3f0] sm:$0xff]
    %v193 = vld [vmem:[#allocation5 + $0x3f8] sm:$0xff]
    %v194 = vld [vmem:[#allocation5 + $0x400] sm:$0xff]
    %v195 = vld [vmem:[#allocation5 + $0x408] sm:$0xff]
    %v196 = vld [vmem:[#allocation5 + $0x410] sm:$0xff]
    %v197 = vld [vmem:[#allocation5 + $0x418] sm:$0xff]
    %v198 = vld [vmem:[#allocation5 + $0x420] sm:$0xff]
    %v199 = vld [vmem:[#allocation5 + $0x428] sm:$0xff]
    %v200 = vld [vmem:[#allocation5 + $0x430] sm:$0xff]
    %v201 = vld [vmem:[#allocation5 + $0x438] sm:$0xff]
    %v202 = vld [vmem:[#allocation5 + $0x440] sm:$0xff]
    %v203 = vld [vmem:[#allocation5 + $0x448] sm:$0xff]
    %v204 = vld [vmem:[#allocation5 + $0x450] sm:$0xff]
    %v205 = vld [vmem:[#allocation5 + $0x458] sm:$0xff]
    %v206 = vld [vmem:[#allocation5 + $0x460] sm:$0xff]
    %v207 = vld [vmem:[#allocation5 + $0x468] sm:$0xff]
    %v208 = vld [vmem:[#allocation5 + $0x470] sm:$0xff]
    %v209 = vld [vmem:[#allocation5 + $0x478] sm:$0xff]
    %v210 = vld [vmem:[#allocation5 + $0x480] sm:$0xff]
    %v211 = vld [vmem:[#allocation5 + $0x488] sm:$0xff]
    %v212 = vld [vmem:[#allocation5 + $0x490] sm:$0xff]
    %v213 = vld [vmem:[#allocation5 + $0x498] sm:$0xff]
    %v214 = vld [vmem:[#allocation5 + $0x4a0] sm:$0xff]
    %v215 = vld [vmem:[#allocation5 + $0x4a8] sm:$0xff]
    %v216 = vld [vmem:[#allocation5 + $0x4b0] sm:$0xff]
    %v217 = vld [vmem:[#allocation5 + $0x4b8] sm:$0xff]
    %v218 = vld [vmem:[#allocation5 + $0x4c0] sm:$0xff]
    %v219 = vld [vmem:[#allocation5 + $0x4c8] sm:$0xff]
    %v220 = vld [vmem:[#allocation5 + $0x4d0] sm:$0xff]
    %v221 = vld [vmem:[#allocation5 + $0x4d8] sm:$0xff]
    %v222 = vld [vmem:[#allocation5 + $0x4e0] sm:$0xff]
    %v223 = vld [vmem:[#allocation5 + $0x4e8] sm:$0xff]
    %v224 = vld [vmem:[#allocation5 + $0x4f0] sm:$0xff]
    %v225 = vld [vmem:[#allocation5 + $0x4f8] sm:$0xff]
    %v226 = vld [vmem:[#allocation5 + $0x500] sm:$0xff]
    %v227 = vld [vmem:[#allocation5 + $0x508] sm:$0xff]
    %v228 = vld [vmem:[#allocation5 + $0x510] sm:$0xff]
    %v229 = vld [vmem:[#allocation5 + $0x518] sm:$0xff]
    %v230 = vld [vmem:[#allocation5 + $0x520] sm:$0xff]
    %v231 = vld [vmem:[#allocation5 + $0x528] sm:$0xff]
    %v232 = vld [vmem:[#allocation5 + $0x530] sm:$0xff]
    %v233 = vld [vmem:[#allocation5 + $0x538] sm:$0xff]
    %v234 = vld [vmem:[#allocation5 + $0x540] sm:$0xff]
    %v235 = vld [vmem:[#allocation5 + $0x548] sm:$0xff]
    %v236 = vld [vmem:[#allocation5 + $0x550] sm:$0xff]
    %v237 = vld [vmem:[#allocation5 + $0x558] sm:$0xff]
    %v238 = vld [vmem:[#allocation5 + $0x560] sm:$0xff]
    %v239 = vld [vmem:[#allocation5 + $0x568] sm:$0xff]
    %v240 = vld [vmem:[#allocation5 + $0x570] sm:$0xff]
    %v241 = vld [vmem:[#allocation5 + $0x578] sm:$0xff]
    %v242 = vld [vmem:[#allocation5 + $0x580] sm:$0xff]
    %v243 = vld [vmem:[#allocation5 + $0x588] sm:$0xff]
    %v244 = vld [vmem:[#allocation5 + $0x590] sm:$0xff]
    %v245 = vld [vmem:[#allocation5 + $0x598] sm:$0xff]
    %v246 = vld [vmem:[#allocation5 + $0x5a0] sm:$0xff]
    %v247 = vld [vmem:[#allocation5 + $0x5a8] sm:$0xff]
    %v248 = vld [vmem:[#allocation5 + $0x5b0] sm:$0xff]
    %v249 = vld [vmem:[#allocation5 + $0x5b8] sm:$0xff]
    %v250 = vld [vmem:[#allocation5 + $0x5c0] sm:$0xff]
    %v251 = vld [vmem:[#allocation5 + $0x5c8] sm:$0xff]
    %v252 = vld [vmem:[#allocation5 + $0x5d0] sm:$0xff]
    %v253 = vld [vmem:[#allocation5 + $0x5d8] sm:$0xff]
    %v254 = vld [vmem:[#allocation5 + $0x5e0] sm:$0xff]
    %v255 = vld [vmem:[#allocation5 + $0x5e8] sm:$0xff]
    %v256 = vld [vmem:[#allocation5 + $0x5f0] sm:$0xff]
    %v257 = vld [vmem:[#allocation5 + $0x5f8] sm:$0xff]
    %v258 = vld [vmem:[#allocation5 + $0x600] sm:$0xff]
    %v259 = vld [vmem:[#allocation5 + $0x608] sm:$0xff]
    %v260 = vld [vmem:[#allocation5 + $0x610] sm:$0xff]
    %v261 = vld [vmem:[#allocation5 + $0x618] sm:$0xff]
    %v262 = vld [vmem:[#allocation5 + $0x620] sm:$0xff]
    %v263 = vld [vmem:[#allocation5 + $0x628] sm:$0xff]
    %v264 = vld [vmem:[#allocation5 + $0x630] sm:$0xff]
    %v265 = vld [vmem:[#allocation5 + $0x638] sm:$0xff]
    %v266 = vld [vmem:[#allocation5 + $0x640] sm:$0xff]
    %v267 = vld [vmem:[#allocation5 + $0x648] sm:$0xff]
    %v268 = vld [vmem:[#allocation5 + $0x650] sm:$0xff]
    %v269 = vld [vmem:[#allocation5 + $0x658] sm:$0xff]
    %v270 = vld [vmem:[#allocation5 + $0x660] sm:$0xff]
    %v271 = vld [vmem:[#allocation5 + $0x668] sm:$0xff]
    %v272 = vld [vmem:[#allocation5 + $0x670] sm:$0xff]
    %v273 = vld [vmem:[#allocation5 + $0x678] sm:$0xff]
    %v274 = vld [vmem:[#allocation5 + $0x680] sm:$0xff]
    %v275 = vld [vmem:[#allocation5 + $0x688] sm:$0xff]
    %v276 = vld [vmem:[#allocation5 + $0x690] sm:$0xff]
    %v277 = vld [vmem:[#allocation5 + $0x698] sm:$0xff]
    %v278 = vld [vmem:[#allocation5 + $0x6a0] sm:$0xff]
    %v279 = vld [vmem:[#allocation5 + $0x6a8] sm:$0xff]
    %v280 = vld [vmem:[#allocation5 + $0x6b0] sm:$0xff]
    %v281 = vld [vmem:[#allocation5 + $0x6b8] sm:$0xff]
    %v282 = vld [vmem:[#allocation5 + $0x6c0] sm:$0xff]
    %v283 = vld [vmem:[#allocation5 + $0x6c8] sm:$0xff]
    %v284 = vld [vmem:[#allocation5 + $0x6d0] sm:$0xff]
    %v285 = vld [vmem:[#allocation5 + $0x6d8] sm:$0xff]
    %v286 = vld [vmem:[#allocation5 + $0x6e0] sm:$0xff]
    %v287 = vld [vmem:[#allocation5 + $0x6e8] sm:$0xff]
    %v288 = vld [vmem:[#allocation5 + $0x6f0] sm:$0xff]
    %v289 = vld [vmem:[#allocation5 + $0x6f8] sm:$0xff]
    %v290 = vld [vmem:[#allocation5 + $0x700] sm:$0xff]
    %v291 = vld [vmem:[#allocation5 + $0x708] sm:$0xff]
    %v292 = vld [vmem:[#allocation5 + $0x710] sm:$0xff]
    %v293 = vld [vmem:[#allocation5 + $0x718] sm:$0xff]
    %v294 = vld [vmem:[#allocation5 + $0x720] sm:$0xff]
    %v295 = vld [vmem:[#allocation5 + $0x728] sm:$0xff]
    %v296 = vld [vmem:[#allocation5 + $0x730] sm:$0xff]
    %v297 = vld [vmem:[#allocation5 + $0x738] sm:$0xff]
    %v298 = vld [vmem:[#allocation5 + $0x740] sm:$0xff]
    %v299 = vld [vmem:[#allocation5 + $0x748] sm:$0xff]
    %v300 = vld [vmem:[#allocation5 + $0x750] sm:$0xff]
    %v301 = vld [vmem:[#allocation5 + $0x758] sm:$0xff]
    %v302 = vld [vmem:[#allocation5 + $0x760] sm:$0xff]
    %v303 = vld [vmem:[#allocation5 + $0x768] sm:$0xff]
    %v304 = vld [vmem:[#allocation5 + $0x770] sm:$0xff]
    %v305 = vld [vmem:[#allocation5 + $0x778] sm:$0xff]
    %v306 = vld [vmem:[#allocation5 + $0x780] sm:$0xff]
    %v307 = vld [vmem:[#allocation5 + $0x788] sm:$0xff]
    %v308 = vld [vmem:[#allocation5 + $0x790] sm:$0xff]
    %v309 = vld [vmem:[#allocation5 + $0x798] sm:$0xff]
    %v310 = vld [vmem:[#allocation5 + $0x7a0] sm:$0xff]
    %v311 = vld [vmem:[#allocation5 + $0x7a8] sm:$0xff]
    %v312 = vld [vmem:[#allocation5 + $0x7b0] sm:$0xff]
    %v313 = vld [vmem:[#allocation5 + $0x7b8] sm:$0xff]
    %v314 = vld [vmem:[#allocation5 + $0x7c0] sm:$0xff]
    %v315 = vld [vmem:[#allocation5 + $0x7c8] sm:$0xff]
    %v316 = vld [vmem:[#allocation5 + $0x7d0] sm:$0xff]
    %v317 = vld [vmem:[#allocation5 + $0x7d8] sm:$0xff]
    %v318 = vld [vmem:[#allocation5 + $0x7e0] sm:$0xff]
    %v319 = vld [vmem:[#allocation5 + $0x7e8] sm:$0xff]
    %v320 = vld [vmem:[#allocation5 + $0x7f0] sm:$0xff]
    %v321 = vld [vmem:[#allocation5 + $0x7f8] sm:$0xff]
    %v322 = vld [vmem:[#allocation5 + $0x800] sm:$0xff]
    %v323 = vld [vmem:[#allocation5 + $0x808] sm:$0xff]
    %v324 = vld [vmem:[#allocation5 + $0x810] sm:$0xff]
    %v325 = vld [vmem:[#allocation5 + $0x818] sm:$0xff]
    %v326 = vld [vmem:[#allocation5 + $0x820] sm:$0xff]
    %v327 = vld [vmem:[#allocation5 + $0x828] sm:$0xff]
    %v328 = vld [vmem:[#allocation5 + $0x830] sm:$0xff]
    %v329 = vld [vmem:[#allocation5 + $0x838] sm:$0xff]
    %v330 = vld [vmem:[#allocation5 + $0x840] sm:$0xff]
    %v331 = vld [vmem:[#allocation5 + $0x848] sm:$0xff]
    %v332 = vld [vmem:[#allocation5 + $0x850] sm:$0xff]
    %v333 = vld [vmem:[#allocation5 + $0x858] sm:$0xff]
    %v334 = vld [vmem:[#allocation5 + $0x860] sm:$0xff]
    %v335 = vld [vmem:[#allocation5 + $0x868] sm:$0xff]
    %v336 = vld [vmem:[#allocation5 + $0x870] sm:$0xff]
    %v337 = vld [vmem:[#allocation5 + $0x878] sm:$0xff]
    %v338 = vld [vmem:[#allocation5 + $0x880] sm:$0xff]
    %v339 = vld [vmem:[#allocation5 + $0x888] sm:$0xff]
    %v340 = vld [vmem:[#allocation5 + $0x890] sm:$0xff]
    %v341 = vld [vmem:[#allocation5 + $0x898] sm:$0xff]
    %v342 = vld [vmem:[#allocation5 + $0x8a0] sm:$0xff]
    %v343 = vld [vmem:[#allocation5 + $0x8a8] sm:$0xff]
    %v344 = vld [vmem:[#allocation5 + $0x8b0] sm:$0xff]
    %v345 = vld [vmem:[#allocation5 + $0x8b8] sm:$0xff]
    %v346 = vld [vmem:[#allocation5 + $0x8c0] sm:$0xff]
    %v347 = vld [vmem:[#allocation5 + $0x8c8] sm:$0xff]
    %v348 = vld [vmem:[#allocation5 + $0x8d0] sm:$0xff]
    %v349 = vld [vmem:[#allocation5 + $0x8d8] sm:$0xff]
    %v350 = vld [vmem:[#allocation5 + $0x8e0] sm:$0xff]
    %v351 = vld [vmem:[#allocation5 + $0x8e8] sm:$0xff]
    %v352 = vld [vmem:[#allocation5 + $0x8f0] sm:$0xff]
    %v353 = vld [vmem:[#allocation5 + $0x8f8] sm:$0xff]
    %v354 = vld [vmem:[#allocation7] sm:$0x3f]
    %v356 = vperm.slane %v354, 0
    %v357 = vperm.slane %v354, 1
    %v358 = vperm.slane %v354, 2
    %v359 = vperm.slane %v354, 3
    %v360 = vperm.slane %v354, 4
    %v361 = vperm.slane %v354, 5
    %368 = vmatpush.msra.mxu0 %v156
    %369 = vmatpush.msra.mxu0 %v150
    %370 = vmatpush.msra.mxu0 %v144
    %371 = vmatpush.msra.mxu0 %v138
    %372 = vmatpush.msra.mxu0 %v132
    %373 = vmatpush.msra.mxu0 %v126
    %374 = vmatpush.msra.mxu0 %v120
    %375 = vmatpush.msra.mxu0 %v114
    %376 = vmatpush.msra.mxu0 %v108
    %377 = vmatpush.msra.mxu0 %v102
    %378 = vmatpush.msra.mxu0 %v96
    %379 = vmatpush.msra.mxu0 %v90
    %380 = vmatpush.msra.mxu0 %v84
    %381 = vmatpush.msra.mxu0 %v78
    %382 = vmatpush.msra.mxu0 %v72
    %383 = vmatpush.msra.mxu0 %v66
    %384 = vmatmul.f32.gmra.mxu0 %v60
    %v385 = vpop.f32.mrf.mxu0
    %v386 = vadd.f32 %v356, %v385
    %387 = vmatmul.f32.gmra.mxu0 %v63
    %v388 = vpop.f32.mrf.mxu0
    %v389 = vadd.f32 %v356, %v388
    %390 = vdwg.mxu0
    %391 = vmatpush.msra.mxu0 %v252
    %392 = vmatpush.msra.mxu0 %v246
    %393 = vmatpush.msra.mxu0 %v240
    %394 = vmatpush.msra.mxu0 %v234
    %395 = vmatpush.msra.mxu0 %v228
    %396 = vmatpush.msra.mxu0 %v222
    %397 = vmatpush.msra.mxu0 %v216
    %398 = vmatpush.msra.mxu0 %v210
    %399 = vmatpush.msra.mxu0 %v204
    %400 = vmatpush.msra.mxu0 %v198
    %401 = vmatpush.msra.mxu0 %v192
    %402 = vmatpush.msra.mxu0 %v186
    %403 = vmatpush.msra.mxu0 %v180
    %404 = vmatpush.msra.mxu0 %v174
    %405 = vmatpush.msra.mxu0 %v168
    %406 = vmatpush.msra.mxu0 %v162
    %407 = vmatmul.f32.gmra.mxu0 %v61
    %v408 = vpop.f32.mrf.mxu0
    %v409 = vadd.f32 %v386, %v408
    %410 = vmatmul.f32.gmra.mxu0 %v64
    %v411 = vpop.f32.mrf.mxu0
    %v412 = vadd.f32 %v389, %v411
    %413 = vdwg.mxu0
    %414 = vmatpush.msra.mxu0 %v348
    %415 = vmatpush.msra.mxu0 %v342
    %416 = vmatpush.msra.mxu0 %v336
    %417 = vmatpush.msra.mxu0 %v330
    %418 = vmatpush.msra.mxu0 %v324
    %419 = vmatpush.msra.mxu0 %v318
    %420 = vmatpush.msra.mxu0 %v312
    %421 = vmatpush.msra.mxu0 %v306
    %422 = vmatpush.msra.mxu0 %v300
    %423 = vmatpush.msra.mxu0 %v294
    %424 = vmatpush.msra.mxu0 %v288
    %425 = vmatpush.msra.mxu0 %v282
    %426 = vmatpush.msra.mxu0 %v276
    %427 = vmatpush.msra.mxu0 %v270
    %428 = vmatpush.msra.mxu0 %v264
    %429 = vmatpush.msra.mxu0 %v258
    %430 = vmatmul.f32.gmra.mxu0 %v62
    %v431 = vpop.f32.mrf.mxu0
    %v432 = vadd.f32 %v409, %v431
    %433 = vmatmul.f32.gmra.mxu0 %v65
    %v434 = vpop.f32.mrf.mxu0
    %v435 = vadd.f32 %v412, %v434
    %436 = vdwg.mxu0
    %437 = vmatpush.msra.mxu0 %v157
    %438 = vmatpush.msra.mxu0 %v151
    %439 = vmatpush.msra.mxu0 %v145
    %440 = vmatpush.msra.mxu0 %v139
    %441 = vmatpush.msra.mxu0 %v133
    %442 = vmatpush.msra.mxu0 %v127
    %443 = vmatpush.msra.mxu0 %v121
    %444 = vmatpush.msra.mxu0 %v115
    %445 = vmatpush.msra.mxu0 %v109
    %446 = vmatpush.msra.mxu0 %v103
    %447 = vmatpush.msra.mxu0 %v97
    %448 = vmatpush.msra.mxu0 %v91
    %449 = vmatpush.msra.mxu0 %v85
    %450 = vmatpush.msra.mxu0 %v79
    %451 = vmatpush.msra.mxu0 %v73
    %452 = vmatpush.msra.mxu0 %v67
    %453 = vmatmul.f32.gmra.mxu0 %v60
    %v454 = vpop.f32.mrf.mxu0
    %v455 = vadd.f32 %v357, %v454
    %456 = vmatmul.f32.gmra.mxu0 %v63
    %v457 = vpop.f32.mrf.mxu0
    %v458 = vadd.f32 %v357, %v457
    %459 = vdwg.mxu0
    %460 = vmatpush.msra.mxu0 %v253
    %461 = vmatpush.msra.mxu0 %v247
    %462 = vmatpush.msra.mxu0 %v241
    %463 = vmatpush.msra.mxu0 %v235
    %464 = vmatpush.msra.mxu0 %v229
    %465 = vmatpush.msra.mxu0 %v223
    %466 = vmatpush.msra.mxu0 %v217
    %467 = vmatpush.msra.mxu0 %v211
    %468 = vmatpush.msra.mxu0 %v205
    %469 = vmatpush.msra.mxu0 %v199
    %470 = vmatpush.msra.mxu0 %v193
    %471 = vmatpush.msra.mxu0 %v187
    %472 = vmatpush.msra.mxu0 %v181
    %473 = vmatpush.msra.mxu0 %v175
    %474 = vmatpush.msra.mxu0 %v169
    %475 = vmatpush.msra.mxu0 %v163
    %476 = vmatmul.f32.gmra.mxu0 %v61
    %v477 = vpop.f32.mrf.mxu0
    %v478 = vadd.f32 %v455, %v477
    %479 = vmatmul.f32.gmra.mxu0 %v64
    %v480 = vpop.f32.mrf.mxu0
    %v481 = vadd.f32 %v458, %v480
    %482 = vdwg.mxu0
    %483 = vmatpush.msra.mxu0 %v349
    %484 = vmatpush.msra.mxu0 %v343
    %485 = vmatpush.msra.mxu0 %v337
    %486 = vmatpush.msra.mxu0 %v331
    %487 = vmatpush.msra.mxu0 %v325
    %488 = vmatpush.msra.mxu0 %v319
    %489 = vmatpush.msra.mxu0 %v313
    %490 = vmatpush.msra.mxu0 %v307
    %491 = vmatpush.msra.mxu0 %v301
    %492 = vmatpush.msra.mxu0 %v295
    %493 = vmatpush.msra.mxu0 %v289
    %494 = vmatpush.msra.mxu0 %v283
    %495 = vmatpush.msra.mxu0 %v277
    %496 = vmatpush.msra.mxu0 %v271
    %497 = vmatpush.msra.mxu0 %v265
    %498 = vmatpush.msra.mxu0 %v259
    %499 = vmatmul.f32.gmra.mxu0 %v62
    %v500 = vpop.f32.mrf.mxu0
    %v501 = vadd.f32 %v478, %v500
    %502 = vmatmul.f32.gmra.mxu0 %v65
    %v503 = vpop.f32.mrf.mxu0
    %v504 = vadd.f32 %v481, %v503
    %505 = vdwg.mxu0
    %506 = vmatpush.msra.mxu0 %v158
    %507 = vmatpush.msra.mxu0 %v152
    %508 = vmatpush.msra.mxu0 %v146
    %509 = vmatpush.msra.mxu0 %v140
    %510 = vmatpush.msra.mxu0 %v134
    %511 = vmatpush.msra.mxu0 %v128
    %512 = vmatpush.msra.mxu0 %v122
    %513 = vmatpush.msra.mxu0 %v116
    %514 = vmatpush.msra.mxu0 %v110
    %515 = vmatpush.msra.mxu0 %v104
    %516 = vmatpush.msra.mxu0 %v98
    %517 = vmatpush.msra.mxu0 %v92
    %518 = vmatpush.msra.mxu0 %v86
    %519 = vmatpush.msra.mxu0 %v80
    %520 = vmatpush.msra.mxu0 %v74
    %521 = vmatpush.msra.mxu0 %v68
    %522 = vmatmul.f32.gmra.mxu0 %v60
    %v523 = vpop.f32.mrf.mxu0
    %v524 = vadd.f32 %v358, %v523
    %525 = vmatmul.f32.gmra.mxu0 %v63
    %v526 = vpop.f32.mrf.mxu0
    %v527 = vadd.f32 %v358, %v526
    %528 = vdwg.mxu0
    %529 = vmatpush.msra.mxu0 %v254
    %530 = vmatpush.msra.mxu0 %v248
    %531 = vmatpush.msra.mxu0 %v242
    %532 = vmatpush.msra.mxu0 %v236
    %533 = vmatpush.msra.mxu0 %v230
    %534 = vmatpush.msra.mxu0 %v224
    %535 = vmatpush.msra.mxu0 %v218
    %536 = vmatpush.msra.mxu0 %v212
    %537 = vmatpush.msra.mxu0 %v206
    %538 = vmatpush.msra.mxu0 %v200
    %539 = vmatpush.msra.mxu0 %v194
    %540 = vmatpush.msra.mxu0 %v188
    %541 = vmatpush.msra.mxu0 %v182
    %542 = vmatpush.msra.mxu0 %v176
    %543 = vmatpush.msra.mxu0 %v170
    %544 = vmatpush.msra.mxu0 %v164
    %545 = vmatmul.f32.gmra.mxu0 %v61
    %v546 = vpop.f32.mrf.mxu0
    %v547 = vadd.f32 %v524, %v546
    %548 = vmatmul.f32.gmra.mxu0 %v64
    %v549 = vpop.f32.mrf.mxu0
    %v550 = vadd.f32 %v527, %v549
    %551 = vdwg.mxu0
    %552 = vmatpush.msra.mxu0 %v350
    %553 = vmatpush.msra.mxu0 %v344
    %554 = vmatpush.msra.mxu0 %v338
    %555 = vmatpush.msra.mxu0 %v332
    %556 = vmatpush.msra.mxu0 %v326
    %557 = vmatpush.msra.mxu0 %v320
    %558 = vmatpush.msra.mxu0 %v314
    %559 = vmatpush.msra.mxu0 %v308
    %560 = vmatpush.msra.mxu0 %v302
    %561 = vmatpush.msra.mxu0 %v296
    %562 = vmatpush.msra.mxu0 %v290
    %563 = vmatpush.msra.mxu0 %v284
    %564 = vmatpush.msra.mxu0 %v278
    %565 = vmatpush.msra.mxu0 %v272
    %566 = vmatpush.msra.mxu0 %v266
    %567 = vmatpush.msra.mxu0 %v260
    %568 = vmatmul.f32.gmra.mxu0 %v62
    %v569 = vpop.f32.mrf.mxu0
    %v570 = vadd.f32 %v547, %v569
    %571 = vmatmul.f32.gmra.mxu0 %v65
    %v572 = vpop.f32.mrf.mxu0
    %v573 = vadd.f32 %v550, %v572
    %574 = vdwg.mxu0
    %575 = vmatpush.msra.mxu0 %v159
    %576 = vmatpush.msra.mxu0 %v153
    %577 = vmatpush.msra.mxu0 %v147
    %578 = vmatpush.msra.mxu0 %v141
    %579 = vmatpush.msra.mxu0 %v135
    %580 = vmatpush.msra.mxu0 %v129
    %581 = vmatpush.msra.mxu0 %v123
    %582 = vmatpush.msra.mxu0 %v117
    %583 = vmatpush.msra.mxu0 %v111
    %584 = vmatpush.msra.mxu0 %v105
    %585 = vmatpush.msra.mxu0 %v99
    %586 = vmatpush.msra.mxu0 %v93
    %587 = vmatpush.msra.mxu0 %v87
    %588 = vmatpush.msra.mxu0 %v81
    %589 = vmatpush.msra.mxu0 %v75
    %590 = vmatpush.msra.mxu0 %v69
    %591 = vmatmul.f32.gmra.mxu0 %v60
    %v592 = vpop.f32.mrf.mxu0
    %v593 = vadd.f32 %v359, %v592
    %594 = vmatmul.f32.gmra.mxu0 %v63
    %v595 = vpop.f32.mrf.mxu0
    %v596 = vadd.f32 %v359, %v595
    %597 = vdwg.mxu0
    %598 = vmatpush.msra.mxu0 %v255
    %599 = vmatpush.msra.mxu0 %v249
    %600 = vmatpush.msra.mxu0 %v243
    %601 = vmatpush.msra.mxu0 %v237
    %602 = vmatpush.msra.mxu0 %v231
    %603 = vmatpush.msra.mxu0 %v225
    %604 = vmatpush.msra.mxu0 %v219
    %605 = vmatpush.msra.mxu0 %v213
    %606 = vmatpush.msra.mxu0 %v207
    %607 = vmatpush.msra.mxu0 %v201
    %608 = vmatpush.msra.mxu0 %v195
    %609 = vmatpush.msra.mxu0 %v189
    %610 = vmatpush.msra.mxu0 %v183
    %611 = vmatpush.msra.mxu0 %v177
    %612 = vmatpush.msra.mxu0 %v171
    %613 = vmatpush.msra.mxu0 %v165
    %614 = vmatmul.f32.gmra.mxu0 %v61
    %v615 = vpop.f32.mrf.mxu0
    %v616 = vadd.f32 %v593, %v615
    %617 = vmatmul.f32.gmra.mxu0 %v64
    %v618 = vpop.f32.mrf.mxu0
    %v619 = vadd.f32 %v596, %v618
    %620 = vdwg.mxu0
    %621 = vmatpush.msra.mxu0 %v351
    %622 = vmatpush.msra.mxu0 %v345
    %623 = vmatpush.msra.mxu0 %v339
    %624 = vmatpush.msra.mxu0 %v333
    %625 = vmatpush.msra.mxu0 %v327
    %626 = vmatpush.msra.mxu0 %v321
    %627 = vmatpush.msra.mxu0 %v315
    %628 = vmatpush.msra.mxu0 %v309
    %629 = vmatpush.msra.mxu0 %v303
    %630 = vmatpush.msra.mxu0 %v297
    %631 = vmatpush.msra.mxu0 %v291
    %632 = vmatpush.msra.mxu0 %v285
    %633 = vmatpush.msra.mxu0 %v279
    %634 = vmatpush.msra.mxu0 %v273
    %635 = vmatpush.msra.mxu0 %v267
    %636 = vmatpush.msra.mxu0 %v261
    %637 = vmatmul.f32.gmra.mxu0 %v62
    %v638 = vpop.f32.mrf.mxu0
    %v639 = vadd.f32 %v616, %v638
    %640 = vmatmul.f32.gmra.mxu0 %v65
    %v641 = vpop.f32.mrf.mxu0
    %v642 = vadd.f32 %v619, %v641
    %643 = vdwg.mxu0
    %644 = vmatpush.msra.mxu0 %v160
    %645 = vmatpush.msra.mxu0 %v154
    %646 = vmatpush.msra.mxu0 %v148
    %647 = vmatpush.msra.mxu0 %v142
    %648 = vmatpush.msra.mxu0 %v136
    %649 = vmatpush.msra.mxu0 %v130
    %650 = vmatpush.msra.mxu0 %v124
    %651 = vmatpush.msra.mxu0 %v118
    %652 = vmatpush.msra.mxu0 %v112
    %653 = vmatpush.msra.mxu0 %v106
    %654 = vmatpush.msra.mxu0 %v100
    %655 = vmatpush.msra.mxu0 %v94
    %656 = vmatpush.msra.mxu0 %v88
    %657 = vmatpush.msra.mxu0 %v82
    %658 = vmatpush.msra.mxu0 %v76
    %659 = vmatpush.msra.mxu0 %v70
    %660 = vmatmul.f32.gmra.mxu0 %v60
    %v661 = vpop.f32.mrf.mxu0
    %v662 = vadd.f32 %v360, %v661
    %663 = vmatmul.f32.gmra.mxu0 %v63
    %v664 = vpop.f32.mrf.mxu0
    %v665 = vadd.f32 %v360, %v664
    %666 = vdwg.mxu0
    %667 = vmatpush.msra.mxu0 %v256
    %668 = vmatpush.msra.mxu0 %v250
    %669 = vmatpush.msra.mxu0 %v244
    %670 = vmatpush.msra.mxu0 %v238
    %671 = vmatpush.msra.mxu0 %v232
    %672 = vmatpush.msra.mxu0 %v226
    %673 = vmatpush.msra.mxu0 %v220
    %674 = vmatpush.msra.mxu0 %v214
    %675 = vmatpush.msra.mxu0 %v208
    %676 = vmatpush.msra.mxu0 %v202
    %677 = vmatpush.msra.mxu0 %v196
    %678 = vmatpush.msra.mxu0 %v190
    %679 = vmatpush.msra.mxu0 %v184
    %680 = vmatpush.msra.mxu0 %v178
    %681 = vmatpush.msra.mxu0 %v172
    %682 = vmatpush.msra.mxu0 %v166
    %683 = vmatmul.f32.gmra.mxu0 %v61
    %v684 = vpop.f32.mrf.mxu0
    %v685 = vadd.f32 %v662, %v684
    %686 = vmatmul.f32.gmra.mxu0 %v64
    %v687 = vpop.f32.mrf.mxu0
    %v688 = vadd.f32 %v665, %v687
    %689 = vdwg.mxu0
    %690 = vmatpush.msra.mxu0 %v352
    %691 = vmatpush.msra.mxu0 %v346
    %692 = vmatpush.msra.mxu0 %v340
    %693 = vmatpush.msra.mxu0 %v334
    %694 = vmatpush.msra.mxu0 %v328
    %695 = vmatpush.msra.mxu0 %v322
    %696 = vmatpush.msra.mxu0 %v316
    %697 = vmatpush.msra.mxu0 %v310
    %698 = vmatpush.msra.mxu0 %v304
    %699 = vmatpush.msra.mxu0 %v298
    %700 = vmatpush.msra.mxu0 %v292
    %701 = vmatpush.msra.mxu0 %v286
    %702 = vmatpush.msra.mxu0 %v280
    %703 = vmatpush.msra.mxu0 %v274
    %704 = vmatpush.msra.mxu0 %v268
    %705 = vmatpush.msra.mxu0 %v262
    %706 = vmatmul.f32.gmra.mxu0 %v62
    %v707 = vpop.f32.mrf.mxu0
    %v708 = vadd.f32 %v685, %v707
    %709 = vmatmul.f32.gmra.mxu0 %v65
    %v710 = vpop.f32.mrf.mxu0
    %v711 = vadd.f32 %v688, %v710
    %712 = vdwg.mxu0
    %713 = vmatpush.msra.mxu0 %v161
    %714 = vmatpush.msra.mxu0 %v155
    %715 = vmatpush.msra.mxu0 %v149
    %716 = vmatpush.msra.mxu0 %v143
    %717 = vmatpush.msra.mxu0 %v137
    %718 = vmatpush.msra.mxu0 %v131
    %719 = vmatpush.msra.mxu0 %v125
    %720 = vmatpush.msra.mxu0 %v119
    %721 = vmatpush.msra.mxu0 %v113
    %722 = vmatpush.msra.mxu0 %v107
    %723 = vmatpush.msra.mxu0 %v101
    %724 = vmatpush.msra.mxu0 %v95
    %725 = vmatpush.msra.mxu0 %v89
    %726 = vmatpush.msra.mxu0 %v83
    %727 = vmatpush.msra.mxu0 %v77
    %728 = vmatpush.msra.mxu0 %v71
    %729 = vmatmul.f32.gmra.mxu0 %v60
    %v730 = vpop.f32.mrf.mxu0
    %v731 = vadd.f32 %v361, %v730
    %732 = vmatmul.f32.gmra.mxu0 %v63
    %v733 = vpop.f32.mrf.mxu0
    %v734 = vadd.f32 %v361, %v733
    %735 = vdwg.mxu0
    %736 = vmatpush.msra.mxu0 %v257
    %737 = vmatpush.msra.mxu0 %v251
    %738 = vmatpush.msra.mxu0 %v245
    %739 = vmatpush.msra.mxu0 %v239
    %740 = vmatpush.msra.mxu0 %v233
    %741 = vmatpush.msra.mxu0 %v227
    %742 = vmatpush.msra.mxu0 %v221
    %743 = vmatpush.msra.mxu0 %v215
    %744 = vmatpush.msra.mxu0 %v209
    %745 = vmatpush.msra.mxu0 %v203
    %746 = vmatpush.msra.mxu0 %v197
    %747 = vmatpush.msra.mxu0 %v191
    %748 = vmatpush.msra.mxu0 %v185
    %749 = vmatpush.msra.mxu0 %v179
    %750 = vmatpush.msra.mxu0 %v173
    %751 = vmatpush.msra.mxu0 %v167
    %752 = vmatmul.f32.gmra.mxu0 %v61
    %v753 = vpop.f32.mrf.mxu0
    %v754 = vadd.f32 %v731, %v753
    %755 = vmatmul.f32.gmra.mxu0 %v64
    %v756 = vpop.f32.mrf.mxu0
    %v757 = vadd.f32 %v734, %v756
    %758 = vdwg.mxu0
    %759 = vmatpush.msra.mxu0 %v353
    %760 = vmatpush.msra.mxu0 %v347
    %761 = vmatpush.msra.mxu0 %v341
    %762 = vmatpush.msra.mxu0 %v335
    %763 = vmatpush.msra.mxu0 %v329
    %764 = vmatpush.msra.mxu0 %v323
    %765 = vmatpush.msra.mxu0 %v317
    %766 = vmatpush.msra.mxu0 %v311
    %767 = vmatpush.msra.mxu0 %v305
    %768 = vmatpush.msra.mxu0 %v299
    %769 = vmatpush.msra.mxu0 %v293
    %770 = vmatpush.msra.mxu0 %v287
    %771 = vmatpush.msra.mxu0 %v281
    %772 = vmatpush.msra.mxu0 %v275
    %773 = vmatpush.msra.mxu0 %v269
    %774 = vmatpush.msra.mxu0 %v263
    %775 = vmatmul.f32.gmra.mxu0 %v62
    %v776 = vpop.f32.mrf.mxu0
    %v777 = vadd.f32 %v754, %v776
    %778 = vmatmul.f32.gmra.mxu0 %v65
    %v779 = vpop.f32.mrf.mxu0
    %v780 = vadd.f32 %v757, %v779
    %781 = vdwg.mxu0
    %782 = vst [vmem:[#allocation8] sm:$0xff] %v432
    %783 = vst [vmem:[#allocation8 + $0x8] sm:$0xff] %v501
    %784 = vst [vmem:[#allocation8 + $0x10] sm:$0xff] %v570
    %785 = vst [vmem:[#allocation8 + $0x18] sm:$0xff] %v639
    %786 = vst [vmem:[#allocation8 + $0x20] sm:$0xff] %v708
    %787 = vst [vmem:[#allocation8 + $0x28] sm:$0xff] %v777
    %788 = vst [vmem:[#allocation8 + $0x30] sm:$0xff] %v435
    %789 = vst [vmem:[#allocation8 + $0x38] sm:$0xff] %v504
    %790 = vst [vmem:[#allocation8 + $0x40] sm:$0xff] %v573
    %791 = vst [vmem:[#allocation8 + $0x48] sm:$0xff] %v642
    %792 = vst [vmem:[#allocation8 + $0x50] sm:$0xff] %v711
    %793 = vst [vmem:[#allocation8 + $0x58] sm:$0xff] %v780
    // Predicated region
    $region26: #{tpu_custom_call.1} parent=1 // pred_check
      _
    $region27: #{tpu_custom_call.1} parent=1 // pred_check_branch
      %795 = sbr.rel (0) target = $region29
    $region28: #{tpu_custom_call.1} parent=1 // pred_region
      %797 = vsyncadd [#allocation4], 0
      %s798 = sshll.u32 [#allocation8], 4
      %s799 = int_to_ptr.vmem [resolvable:$true] %s798
      %s800 = sshll.u32 %s3, 4
      %s801 = int_to_ptr.hbm [resolvable:$true] %s800
      %806 = dma.vmem_to_hbm [thread:$0]  %s799, 1536, %s801, [#allocation4], 768, 768, 48
    $region29: #{tpu_custom_call.1} parent=1 // pred_fallthru
      _
    // Predicated region
    $region30: #{tpu_custom_call.1} parent=1 // pred_check
      _
    $region31: #{tpu_custom_call.1} parent=1 // pred_check_branch
      %808 = sbr.rel (0) target = $region33
    $region32: #{tpu_custom_call.1} parent=1 // pred_region
      %810 = dma.done [#allocation4], 1536
    $region33: #{tpu_custom_call.1} parent=1 // pred_fallthru
      _
    %811 = vsyncpa [#allocation3], 1
    %812 = vsyncpa [#allocation6], 1
    %813 = vsyncpa [#allocation4], 1

</llo_original>
